<compile_context>
chip_gen: v5e
topology: v5e:2x2
jax: 0.10.0
libtpu: 0.0.40
codegen_flags: <defaults>
</compile_context>

<pallas_src>
import numpy as np
import jax
import jax.numpy as jnp
from jax.experimental import pallas as pl
from jax.experimental.pallas import tpu as pltpu


def _round_up(v, m):
    return (v + m - 1) // m * m


def synth_weights(rates, scales, kernel_size):
    """Mirror of the PyTorch weight synthesis (tiny one-time parameter setup)."""
    # TODO(synk): the sinusoidal weight synthesis is O(C_out*C_in*KH*KW) one-time
    # parameter setup; it stays in plain JAX/XLA, only the conv runs in Pallas.
    KH, KW = kernel_size
    t = np.arange(KW, dtype=np.float32)
    f = np.arange(KH, dtype=np.float32)
    mesh_t, mesh_f = np.meshgrid(t, f)                        # each (KH, KW)
    WW = np.outer(np.hanning(KH), np.hanning(KW)).astype(np.float32)
    w4d = (jnp.sin(rates[:, :, None, None] * mesh_t[None, None]
                   + scales[:, :, None, None] * mesh_f[None, None])
           * WW[None, None])                                  # (C_out, C_in, KH, KW)
    return w4d.astype(jnp.float32)


def build_rsconv2d_conv(N, C_in, C_out, H, W, KH, KW, PH, PW):
    Wp = W + 2 * PW                   # padded width == flat row stride
    Hp = H + 2 * PH
    OH = Hp - KH + 1                  # output height (stride=1, dilation=1)
    K = KH * KW * C_in                # matmul contraction size
    HWf = H * Wp                      # flat length of the W-padded interior rows
    NW = _round_up(OH * Wp, 128)      # lane-dense matmul N / stored row length
    # Flat padded-image scratch must cover the largest tap offset + NW lanes.
    LF = _round_up((KH - 1) * Wp + (KW - 1) + NW, 128)

    def conv_kernel(w_ref, x_ref, o_ref, xf_ref, xcol_ref):
        # w_ref:    (C_out, K)    lane-dense weight matrix, K = (kh*KW+kw)*C_in + c
        # x_ref:    (C_in, H*Wp)  W-padded rows of one batch element, row-flattened
        # o_ref:    (C_out, NW)   wide flat output (garbage columns trimmed outside)
        # xf_ref:   (C_in, LF)    fully padded flat image (H padding = zero rows)
        # xcol_ref: (K, NW)       im2col slab
        xf_ref[...] = jnp.zeros_like(xf_ref)
        xf_ref[:, PH * Wp: PH * Wp + HWf] = x_ref[...]
        # im2col: one contiguous lane slice per kernel tap (KH*KW small -> unrolled).
        for kh in range(KH):
            for kw in range(KW):
                t = kh * KW + kw
                off = kh * Wp + kw
                xcol_ref[t * C_in:(t + 1) * C_in, :] = xf_ref[:, off:off + NW]
        # Single lane-dense MXU matmul: (C_out, K) x (K, NW).
        o_ref[...] = jnp.dot(w_ref[...], xcol_ref[...],
                             preferred_element_type=jnp.float32)

    cost = pl.CostEstimate(
        flops=2 * N * C_out * K * NW,
        transcendentals=0,
        bytes_accessed=4 * (N * C_in * HWf + C_out * K + N * C_out * NW),
    )
    # TODO(synk): for production-scale H/W/C add a second "parallel" grid axis over
    # output-row tiles (halo via pl.Element row offsets) so the per-step working
    # set stays inside v7x's 64 MiB VMEM and megacore gets more parallel slices.
    return pl.pallas_call(
        conv_kernel,
        out_shape=jax.ShapeDtypeStruct((N, C_out, NW), jnp.float32),
        grid=(N,),
        in_specs=[
            pl.BlockSpec((C_out, K), lambda n: (0, 0)),
            pl.BlockSpec((None, C_in, HWf), lambda n: (n, 0, 0)),
        ],
        out_specs=pl.BlockSpec((None, C_out, NW), lambda n: (n, 0, 0)),
        scratch_shapes=[
            pltpu.VMEM((C_in, LF), jnp.float32),
            pltpu.VMEM((K, NW), jnp.float32),
        ],
        compiler_params=pltpu.CompilerParams(
            dimension_semantics=("parallel",),
            vmem_limit_bytes=32 * 1024 * 1024,
        ),
        cost_estimate=cost,
    )


def rsconv2d_forward(x, rates, scales, kernel_size, padding):
    """Pallas implementation of rsconv2d.forward.  x: (N, C_in, H, W) float32."""
    N, C_in, H, W = x.shape
    C_out = rates.shape[0]
    KH, KW = kernel_size
    PH, PW = padding
    Wp = W + 2 * PW
    OH = H + 2 * PH - KH + 1
    OW = W + 2 * PW - KW + 1

    w4d = synth_weights(rates, scales, (KH, KW))              # (C_out, C_in, KH, KW)
    # One lane-dense 2-D weight matrix; K index = (kh*KW + kw)*C_in + c.
    w2d = jnp.transpose(w4d, (0, 2, 3, 1)).reshape(C_out, KH * KW * C_in)

    # Pad only the W (lane) axis host-side; H padding is added in-kernel as zero
    # rows of the flat scratch (no full padded copy of the input through HBM).
    x_wpad = jnp.pad(x.astype(jnp.float32), ((0, 0), (0, 0), (0, 0), (PW, PW)))
    x_flat = x_wpad.reshape(N, C_in, H * Wp)

    conv = build_rsconv2d_conv(N, C_in, C_out, H, W, KH, KW, PH, PW)
    out_wide = conv(w2d, x_flat)                              # (N, C_out, NW)
    # Trim the wide flat output back to the true (OH, OW) window (layout plumbing).
    out = out_wide[:, :, :OH * Wp].reshape(N, C_out, OH, Wp)[:, :, :, :OW]
    return out


if __name__ == "__main__":
    key = jax.random.PRNGKey(0)
    k1, k2, k3 = jax.random.split(key, 3)

    N, C_in, C_out, H, W = 2, 4, 6, 16, 16
    kernel_size, padding = (5, 5), (2, 2)

    x = jax.random.normal(k1, (N, C_in, H, W), jnp.float32)
    # Parameters: module __init__ shapes are (out_c, in_c); rates ~ U[0,1) like
    # torch.rand; scales given small nonzero values to exercise the frequency term.
    rates = jax.random.uniform(k2, (C_out, C_in), jnp.float32)
    scales = 0.5 * jax.random.uniform(k3, (C_out, C_in), jnp.float32)

    out = rsconv2d_forward(x, rates, scales, kernel_size, padding)
    out = jax.block_until_ready(out)
    assert out.shape == (N, C_out, H, W), out.shape

    # Cross-check against a highest-precision XLA conv with identical weights.
    w4d = synth_weights(rates, scales, kernel_size)
    ref = jax.lax.conv_general_dilated(
        x, w4d, window_strides=(1, 1),
        padding=((padding[0], padding[0]), (padding[1], padding[1])),
        dimension_numbers=("NCHW", "OIHW", "NCHW"),
        precision=jax.lax.Precision.HIGHEST)
    err = float(jnp.max(jnp.abs(out - ref)))
    ref_scale = float(jnp.max(jnp.abs(ref)))
    # Tolerance covers MXU f32 multi-pass emulation / summation-order differences.
    assert err <= 1e-2 * ref_scale + 1e-3, (err, ref_scale)

    print("KERNEL_OK")
</pallas_src>

<mosaic_0001>
module attributes {stable_mosaic.version = 11 : i64} {
  func.func @conv_kernel(%arg0: i32, %arg1: memref<6x100xf32, #tpu.memory_space<vmem>>, %arg2: memref<1x4x320xf32, #tpu.memory_space<vmem>>, %arg3: memref<1x6x384xf32, #tpu.memory_space<vmem>>, %arg4: memref<4x512xf32, #tpu.memory_space<vmem>>, %arg5: memref<100x384xf32, #tpu.memory_space<vmem>>) attributes {dimension_semantics = [#tpu.dimension_semantics<parallel>], iteration_bounds = array<i64: 2>, scalar_prefetch = 0 : i64, scratch_operands = 2 : i64, tpu.core_type = #tpu.core_type<tc>, window_params = [{pipeline_mode = #tpu.pipeline_mode<synchronous>, transform_indices = @transform_0, window_bounds = array<i64: 6, 100>}, {transform_indices = @transform_1, window_bounds = array<i64: 1, 4, 320>}, {transform_indices = @transform_2, window_bounds = array<i64: 1, 6, 384>}]} {
    %cst = arith.constant 0.000000e+00 : f32
    %0 = vector.broadcast %cst : f32 to vector<4x512xf32>
    %c0 = arith.constant 0 : index
    %c0_0 = arith.constant 0 : index
    %1 = vector.load %arg4[%c0, %c0_0] : memref<4x512xf32, #tpu.memory_space<vmem>>, vector<4x512xf32>
    tpu.vector_store %arg4[%c0, %c0_0], %0 {strides = array<i32>} : memref<4x512xf32, #tpu.memory_space<vmem>>, vector<4x512xf32>,
    %c0_1 = arith.constant 0 : index
    %c0_2 = arith.constant 0 : index
    %c0_3 = arith.constant 0 : index
    %2 = vector.load %arg2[%c0_1, %c0_2, %c0_3] : memref<1x4x320xf32, #tpu.memory_space<vmem>>, vector<1x4x320xf32>
    %3 = vector.shape_cast %2 : vector<1x4x320xf32> to vector<4x320xf32>
    %c0_4 = arith.constant 0 : index
    %c40 = arith.constant 40 : index
    %4 = vector.load %arg4[%c0_4, %c40] : memref<4x512xf32, #tpu.memory_space<vmem>>, vector<4x320xf32>
    tpu.vector_store %arg4[%c0_4, %c40], %3 {strides = array<i32>} : memref<4x512xf32, #tpu.memory_space<vmem>>, vector<4x320xf32>,
    %c0_5 = arith.constant 0 : index
    %c0_6 = arith.constant 0 : index
    %5 = vector.load %arg4[%c0_5, %c0_6] : memref<4x512xf32, #tpu.memory_space<vmem>>, vector<4x384xf32>
    %c0_7 = arith.constant 0 : index
    %c0_8 = arith.constant 0 : index
    %6 = vector.load %arg5[%c0_7, %c0_8] : memref<100x384xf32, #tpu.memory_space<vmem>>, vector<4x384xf32>
    tpu.vector_store %arg5[%c0_7, %c0_8], %5 {strides = array<i32>} : memref<100x384xf32, #tpu.memory_space<vmem>>, vector<4x384xf32>,
    %c0_9 = arith.constant 0 : index
    %c1 = arith.constant 1 : index
    %7 = vector.load %arg4[%c0_9, %c1] : memref<4x512xf32, #tpu.memory_space<vmem>>, vector<4x384xf32>
    %c4 = arith.constant 4 : index
    %c0_10 = arith.constant 0 : index
    %8 = vector.load %arg5[%c4, %c0_10] : memref<100x384xf32, #tpu.memory_space<vmem>>, vector<4x384xf32>
    tpu.vector_store %arg5[%c4, %c0_10], %7 {strides = array<i32>} : memref<100x384xf32, #tpu.memory_space<vmem>>, vector<4x384xf32>,
    %c0_11 = arith.constant 0 : index
    %c2 = arith.constant 2 : index
    %9 = vector.load %arg4[%c0_11, %c2] : memref<4x512xf32, #tpu.memory_space<vmem>>, vector<4x384xf32>
    %c8 = arith.constant 8 : index
    %c0_12 = arith.constant 0 : index
    %10 = vector.load %arg5[%c8, %c0_12] : memref<100x384xf32, #tpu.memory_space<vmem>>, vector<4x384xf32>
    tpu.vector_store %arg5[%c8, %c0_12], %9 {strides = array<i32>} : memref<100x384xf32, #tpu.memory_space<vmem>>, vector<4x384xf32>,
    %c0_13 = arith.constant 0 : index
    %c3 = arith.constant 3 : index
    %11 = vector.load %arg4[%c0_13, %c3] : memref<4x512xf32, #tpu.memory_space<vmem>>, vector<4x384xf32>
    %c12 = arith.constant 12 : index
    %c0_14 = arith.constant 0 : index
    %12 = vector.load %arg5[%c12, %c0_14] : memref<100x384xf32, #tpu.memory_space<vmem>>, vector<4x384xf32>
    tpu.vector_store %arg5[%c12, %c0_14], %11 {strides = array<i32>} : memref<100x384xf32, #tpu.memory_space<vmem>>, vector<4x384xf32>,
    %c0_15 = arith.constant 0 : index
    %c4_16 = arith.constant 4 : index
    %13 = vector.load %arg4[%c0_15, %c4_16] : memref<4x512xf32, #tpu.memory_space<vmem>>, vector<4x384xf32>
    %c16 = arith.constant 16 : index
    %c0_17 = arith.constant 0 : index
    %14 = vector.load %arg5[%c16, %c0_17] : memref<100x384xf32, #tpu.memory_space<vmem>>, vector<4x384xf32>
    tpu.vector_store %arg5[%c16, %c0_17], %13 {strides = array<i32>} : memref<100x384xf32, #tpu.memory_space<vmem>>, vector<4x384xf32>,
    %c0_18 = arith.constant 0 : index
    %c20 = arith.constant 20 : index
    %15 = vector.load %arg4[%c0_18, %c20] : memref<4x512xf32, #tpu.memory_space<vmem>>, vector<4x384xf32>
    %c20_19 = arith.constant 20 : index
    %c0_20 = arith.constant 0 : index
    %16 = vector.load %arg5[%c20_19, %c0_20] : memref<100x384xf32, #tpu.memory_space<vmem>>, vector<4x384xf32>
    tpu.vector_store %arg5[%c20_19, %c0_20], %15 {strides = array<i32>} : memref<100x384xf32, #tpu.memory_space<vmem>>, vector<4x384xf32>,
    %c0_21 = arith.constant 0 : index
    %c21 = arith.constant 21 : index
    %17 = vector.load %arg4[%c0_21, %c21] : memref<4x512xf32, #tpu.memory_space<vmem>>, vector<4x384xf32>
    %c24 = arith.constant 24 : index
    %c0_22 = arith.constant 0 : index
    %18 = vector.load %arg5[%c24, %c0_22] : memref<100x384xf32, #tpu.memory_space<vmem>>, vector<4x384xf32>
    tpu.vector_store %arg5[%c24, %c0_22], %17 {strides = array<i32>} : memref<100x384xf32, #tpu.memory_space<vmem>>, vector<4x384xf32>,
    %c0_23 = arith.constant 0 : index
    %c22 = arith.constant 22 : index
    %19 = vector.load %arg4[%c0_23, %c22] : memref<4x512xf32, #tpu.memory_space<vmem>>, vector<4x384xf32>
    %c28 = arith.constant 28 : index
    %c0_24 = arith.constant 0 : index
    %20 = vector.load %arg5[%c28, %c0_24] : memref<100x384xf32, #tpu.memory_space<vmem>>, vector<4x384xf32>
    tpu.vector_store %arg5[%c28, %c0_24], %19 {strides = array<i32>} : memref<100x384xf32, #tpu.memory_space<vmem>>, vector<4x384xf32>,
    %c0_25 = arith.constant 0 : index
    %c23 = arith.constant 23 : index
    %21 = vector.load %arg4[%c0_25, %c23] : memref<4x512xf32, #tpu.memory_space<vmem>>, vector<4x384xf32>
    %c32 = arith.constant 32 : index
    %c0_26 = arith.constant 0 : index
    %22 = vector.load %arg5[%c32, %c0_26] : memref<100x384xf32, #tpu.memory_space<vmem>>, vector<4x384xf32>
    tpu.vector_store %arg5[%c32, %c0_26], %21 {strides = array<i32>} : memref<100x384xf32, #tpu.memory_space<vmem>>, vector<4x384xf32>,
    %c0_27 = arith.constant 0 : index
    %c24_28 = arith.constant 24 : index
    %23 = vector.load %arg4[%c0_27, %c24_28] : memref<4x512xf32, #tpu.memory_space<vmem>>, vector<4x384xf32>
    %c36 = arith.constant 36 : index
    %c0_29 = arith.constant 0 : index
    %24 = vector.load %arg5[%c36, %c0_29] : memref<100x384xf32, #tpu.memory_space<vmem>>, vector<4x384xf32>
    tpu.vector_store %arg5[%c36, %c0_29], %23 {strides = array<i32>} : memref<100x384xf32, #tpu.memory_space<vmem>>, vector<4x384xf32>,
    %c0_30 = arith.constant 0 : index
    %c40_31 = arith.constant 40 : index
    %25 = vector.load %arg4[%c0_30, %c40_31] : memref<4x512xf32, #tpu.memory_space<vmem>>, vector<4x384xf32>
    %c40_32 = arith.constant 40 : index
    %c0_33 = arith.constant 0 : index
    %26 = vector.load %arg5[%c40_32, %c0_33] : memref<100x384xf32, #tpu.memory_space<vmem>>, vector<4x384xf32>
    tpu.vector_store %arg5[%c40_32, %c0_33], %25 {strides = array<i32>} : memref<100x384xf32, #tpu.memory_space<vmem>>, vector<4x384xf32>,
    %c0_34 = arith.constant 0 : index
    %c41 = arith.constant 41 : index
    %27 = vector.load %arg4[%c0_34, %c41] : memref<4x512xf32, #tpu.memory_space<vmem>>, vector<4x384xf32>
    %c44 = arith.constant 44 : index
    %c0_35 = arith.constant 0 : index
    %28 = vector.load %arg5[%c44, %c0_35] : memref<100x384xf32, #tpu.memory_space<vmem>>, vector<4x384xf32>
    tpu.vector_store %arg5[%c44, %c0_35], %27 {strides = array<i32>} : memref<100x384xf32, #tpu.memory_space<vmem>>, vector<4x384xf32>,
    %c0_36 = arith.constant 0 : index
    %c42 = arith.constant 42 : index
    %29 = vector.load %arg4[%c0_36, %c42] : memref<4x512xf32, #tpu.memory_space<vmem>>, vector<4x384xf32>
    %c48 = arith.constant 48 : index
    %c0_37 = arith.constant 0 : index
    %30 = vector.load %arg5[%c48, %c0_37] : memref<100x384xf32, #tpu.memory_space<vmem>>, vector<4x384xf32>
    tpu.vector_store %arg5[%c48, %c0_37], %29 {strides = array<i32>} : memref<100x384xf32, #tpu.memory_space<vmem>>, vector<4x384xf32>,
    %c0_38 = arith.constant 0 : index
    %c43 = arith.constant 43 : index
    %31 = vector.load %arg4[%c0_38, %c43] : memref<4x512xf32, #tpu.memory_space<vmem>>, vector<4x384xf32>
    %c52 = arith.constant 52 : index
    %c0_39 = arith.constant 0 : index
    %32 = vector.load %arg5[%c52, %c0_39] : memref<100x384xf32, #tpu.memory_space<vmem>>, vector<4x384xf32>
    tpu.vector_store %arg5[%c52, %c0_39], %31 {strides = array<i32>} : memref<100x384xf32, #tpu.memory_space<vmem>>, vector<4x384xf32>,
    %c0_40 = arith.constant 0 : index
    %c44_41 = arith.constant 44 : index
    %33 = vector.load %arg4[%c0_40, %c44_41] : memref<4x512xf32, #tpu.memory_space<vmem>>, vector<4x384xf32>
    %c56 = arith.constant 56 : index
    %c0_42 = arith.constant 0 : index
    %34 = vector.load %arg5[%c56, %c0_42] : memref<100x384xf32, #tpu.memory_space<vmem>>, vector<4x384xf32>
    tpu.vector_store %arg5[%c56, %c0_42], %33 {strides = array<i32>} : memref<100x384xf32, #tpu.memory_space<vmem>>, vector<4x384xf32>,
    %c0_43 = arith.constant 0 : index
    %c60 = arith.constant 60 : index
    %35 = vector.load %arg4[%c0_43, %c60] : memref<4x512xf32, #tpu.memory_space<vmem>>, vector<4x384xf32>
    %c60_44 = arith.constant 60 : index
    %c0_45 = arith.constant 0 : index
    %36 = vector.load %arg5[%c60_44, %c0_45] : memref<100x384xf32, #tpu.memory_space<vmem>>, vector<4x384xf32>
    tpu.vector_store %arg5[%c60_44, %c0_45], %35 {strides = array<i32>} : memref<100x384xf32, #tpu.memory_space<vmem>>, vector<4x384xf32>,
    %c0_46 = arith.constant 0 : index
    %c61 = arith.constant 61 : index
    %37 = vector.load %arg4[%c0_46, %c61] : memref<4x512xf32, #tpu.memory_space<vmem>>, vector<4x384xf32>
    %c64 = arith.constant 64 : index
    %c0_47 = arith.constant 0 : index
    %38 = vector.load %arg5[%c64, %c0_47] : memref<100x384xf32, #tpu.memory_space<vmem>>, vector<4x384xf32>
    tpu.vector_store %arg5[%c64, %c0_47], %37 {strides = array<i32>} : memref<100x384xf32, #tpu.memory_space<vmem>>, vector<4x384xf32>,
    %c0_48 = arith.constant 0 : index
    %c62 = arith.constant 62 : index
    %39 = vector.load %arg4[%c0_48, %c62] : memref<4x512xf32, #tpu.memory_space<vmem>>, vector<4x384xf32>
    %c68 = arith.constant 68 : index
    %c0_49 = arith.constant 0 : index
    %40 = vector.load %arg5[%c68, %c0_49] : memref<100x384xf32, #tpu.memory_space<vmem>>, vector<4x384xf32>
    tpu.vector_store %arg5[%c68, %c0_49], %39 {strides = array<i32>} : memref<100x384xf32, #tpu.memory_space<vmem>>, vector<4x384xf32>,
    %c0_50 = arith.constant 0 : index
    %c63 = arith.constant 63 : index
    %41 = vector.load %arg4[%c0_50, %c63] : memref<4x512xf32, #tpu.memory_space<vmem>>, vector<4x384xf32>
    %c72 = arith.constant 72 : index
    %c0_51 = arith.constant 0 : index
    %42 = vector.load %arg5[%c72, %c0_51] : memref<100x384xf32, #tpu.memory_space<vmem>>, vector<4x384xf32>
    tpu.vector_store %arg5[%c72, %c0_51], %41 {strides = array<i32>} : memref<100x384xf32, #tpu.memory_space<vmem>>, vector<4x384xf32>,
    %c0_52 = arith.constant 0 : index
    %c64_53 = arith.constant 64 : index
    %43 = vector.load %arg4[%c0_52, %c64_53] : memref<4x512xf32, #tpu.memory_space<vmem>>, vector<4x384xf32>
    %c76 = arith.constant 76 : index
    %c0_54 = arith.constant 0 : index
    %44 = vector.load %arg5[%c76, %c0_54] : memref<100x384xf32, #tpu.memory_space<vmem>>, vector<4x384xf32>
    tpu.vector_store %arg5[%c76, %c0_54], %43 {strides = array<i32>} : memref<100x384xf32, #tpu.memory_space<vmem>>, vector<4x384xf32>,
    %c0_55 = arith.constant 0 : index
    %c80 = arith.constant 80 : index
    %45 = vector.load %arg4[%c0_55, %c80] : memref<4x512xf32, #tpu.memory_space<vmem>>, vector<4x384xf32>
    %c80_56 = arith.constant 80 : index
    %c0_57 = arith.constant 0 : index
    %46 = vector.load %arg5[%c80_56, %c0_57] : memref<100x384xf32, #tpu.memory_space<vmem>>, vector<4x384xf32>
    tpu.vector_store %arg5[%c80_56, %c0_57], %45 {strides = array<i32>} : memref<100x384xf32, #tpu.memory_space<vmem>>, vector<4x384xf32>,
    %c0_58 = arith.constant 0 : index
    %c81 = arith.constant 81 : index
    %47 = vector.load %arg4[%c0_58, %c81] : memref<4x512xf32, #tpu.memory_space<vmem>>, vector<4x384xf32>
    %c84 = arith.constant 84 : index
    %c0_59 = arith.constant 0 : index
    %48 = vector.load %arg5[%c84, %c0_59] : memref<100x384xf32, #tpu.memory_space<vmem>>, vector<4x384xf32>
    tpu.vector_store %arg5[%c84, %c0_59], %47 {strides = array<i32>} : memref<100x384xf32, #tpu.memory_space<vmem>>, vector<4x384xf32>,
    %c0_60 = arith.constant 0 : index
    %c82 = arith.constant 82 : index
    %49 = vector.load %arg4[%c0_60, %c82] : memref<4x512xf32, #tpu.memory_space<vmem>>, vector<4x384xf32>
    %c88 = arith.constant 88 : index
    %c0_61 = arith.constant 0 : index
    %50 = vector.load %arg5[%c88, %c0_61] : memref<100x384xf32, #tpu.memory_space<vmem>>, vector<4x384xf32>
    tpu.vector_store %arg5[%c88, %c0_61], %49 {strides = array<i32>} : memref<100x384xf32, #tpu.memory_space<vmem>>, vector<4x384xf32>,
    %c0_62 = arith.constant 0 : index
    %c83 = arith.constant 83 : index
    %51 = vector.load %arg4[%c0_62, %c83] : memref<4x512xf32, #tpu.memory_space<vmem>>, vector<4x384xf32>
    %c92 = arith.constant 92 : index
    %c0_63 = arith.constant 0 : index
    %52 = vector.load %arg5[%c92, %c0_63] : memref<100x384xf32, #tpu.memory_space<vmem>>, vector<4x384xf32>
    tpu.vector_store %arg5[%c92, %c0_63], %51 {strides = array<i32>} : memref<100x384xf32, #tpu.memory_space<vmem>>, vector<4x384xf32>,
    %c0_64 = arith.constant 0 : index
    %c84_65 = arith.constant 84 : index
    %53 = vector.load %arg4[%c0_64, %c84_65] : memref<4x512xf32, #tpu.memory_space<vmem>>, vector<4x384xf32>
    %c96 = arith.constant 96 : index
    %c0_66 = arith.constant 0 : index
    %54 = vector.load %arg5[%c96, %c0_66] : memref<100x384xf32, #tpu.memory_space<vmem>>, vector<4x384xf32>
    tpu.vector_store %arg5[%c96, %c0_66], %53 {strides = array<i32>} : memref<100x384xf32, #tpu.memory_space<vmem>>, vector<4x384xf32>,
    %c0_67 = arith.constant 0 : index
    %c0_68 = arith.constant 0 : index
    %55 = vector.load %arg1[%c0_67, %c0_68] : memref<6x100xf32, #tpu.memory_space<vmem>>, vector<6x100xf32>
    %c0_69 = arith.constant 0 : index
    %c0_70 = arith.constant 0 : index
    %56 = vector.load %arg5[%c0_69, %c0_70] : memref<100x384xf32, #tpu.memory_space<vmem>>, vector<100x384xf32>
    %cst_71 = arith.constant dense<0.000000e+00> : vector<6x384xf32>
    %57 = tpu.matmul %55, %56, %cst_71 {dimension_numbers = #tpu.dot_dimension_numbers<[1], [0], [0], [1], [0, 0, 1, 1], [], []>} : vector<6x100xf32>, vector<100x384xf32>, vector<6x384xf32> -> vector<6x384xf32>
    %c0_72 = arith.constant 0 : index
    %c0_73 = arith.constant 0 : index
    %c0_74 = arith.constant 0 : index
    %58 = vector.load %arg3[%c0_72, %c0_73, %c0_74] : memref<1x6x384xf32, #tpu.memory_space<vmem>>, vector<1x6x384xf32>
    %59 = vector.shape_cast %58 : vector<1x6x384xf32> to vector<6x384xf32>
    %60 = vector.shape_cast %57 : vector<6x384xf32> to vector<1x6x384xf32>
    tpu.vector_store %arg3[%c0_72, %c0_73, %c0_74], %60 {strides = array<i32>} : memref<1x6x384xf32, #tpu.memory_space<vmem>>, vector<1x6x384xf32>,
    return
  }
  func.func @transform_0(%arg0: i32) -> (i32, i32) {
    %c0_i32 = arith.constant 0 : i32
    %c0_i32_0 = arith.constant 0 : i32
    %c0_i32_1 = arith.constant 0 : i32
    return %c0_i32, %c0_i32_0 : i32, i32
  }
  func.func @transform_1(%arg0: i32) -> (i32, i32, i32) {
    %c0_i32 = arith.constant 0 : i32
    %c0_i32_0 = arith.constant 0 : i32
    %c0_i32_1 = arith.constant 0 : i32
    return %arg0, %c0_i32, %c0_i32_0 : i32, i32, i32
  }
  func.func @transform_2(%arg0: i32) -> (i32, i32, i32) {
    %c0_i32 = arith.constant 0 : i32
    %c0_i32_0 = arith.constant 0 : i32
    %c0_i32_1 = arith.constant 0 : i32
    return %arg0, %c0_i32, %c0_i32_0 : i32, i32, i32
  }
}

</mosaic_0001>

<llo_original>
// kernel: tpu_custom_call.1
$region0: #{tpu_custom_call.1}
  #allocation0 [shape = 'u32[]', space=smem, size = 0x4, offset = 0x4, fixed_abs, tag = 'smem constant byte address 0x4 - core index']
  #allocation1 [shape = 'u32[72,128]{1,0:T(1,128)}', space=vmem, size = 0x9000, scoped, tag = 'internal scratch']
  #allocation2 [shape = 'f32[4,512]{1,0:T(4,128)}', space=vmem, size = 0x2000, scoped, tag = 'scratch operand']
  #allocation3 [shape = 'f32[100,384]{1,0:T(8,128)}', space=vmem, size = 0x27000, scoped, tag = 'scratch operand']
  %s0 = inlined_call_operand.hbm [shape: f32[6,100], index: 0, kind: input, shape index: {}]
  %s1 = inlined_call_operand.hbm [shape: f32[2,4,320], index: 1, kind: input, shape index: {}]
  %s2 = inlined_call_operand.vmem [shape: f32[2,6,384], index: 2, kind: output, shape index: {}]
  %s3 = sld [smem:[#allocation0]]
  $region49: #{tpu_custom_call.1} parent=0
    _
  %s5 = ssub.s32 1, %s3
  %s6 = scalar_select 0, %s5, %s3
  $region1: #{tpu_custom_call.1} parent=0
    #allocation4 [shape = 'u8[4096]{0}', space=vmem, size = 0x1000, scoped, tag = 'input window, operand 0, single buffered']
    #allocation5 [shape = 's32[2]{0}', space=sflag, size = 0x8, scoped, tag = 'scoped memory for tpu_custom_call.1']
    #allocation6 [shape = 'u8[12288]{0}', space=vmem, size = 0x3000, scoped, tag = 'input window, operand 1']
    #allocation7 [shape = 's32[2]{0}', space=sflag, size = 0x8, scoped, tag = 'scoped memory for tpu_custom_call.1']
    %7 = vsyncpa [#allocation5], 0
    %8 = vsyncpa [#allocation7], 0
    %s9 = scalar_lea.sflag [#allocation7], 1
    %10 = vsyncpa %s9, 0
    loop: start=0, step=1, limit=4
    $region2: #{tpu_custom_call.1} parent=1 // loop_pre_header
      _
    $region3: #{tpu_custom_call.1} parent=1 // loop_header
      %s12 = sphi 0, %s16
      %p13 = scmp.ge.s32.totalorder %s12, 4
      %s20 = sphi 0, %s20
      %s22 = sphi 0, %s20
      %s23 = sphi 0, %s22
      %s37 = sphi 0, %s23
      %s43 = sphi 0, %s45
      %s46 = sphi 0, %s43
      %s47 = sphi 0, %s46
      %s63 = sphi 0, %s47
      %s69 = sphi 0, %s71
      %s72 = sphi 0, %s69
      %s73 = sphi 0, %s72
      %s89 = sphi 0, %s73
    $region4: #{tpu_custom_call.1} parent=1 // loop_header_branch
      %15 = sbr.rel (%p13) target = $region8
    $region5: #{tpu_custom_call.1} parent=1 // loop_body
      %s17 = ssub.s32 %s12, 1
      %s18 = ssub.s32 %s12, 2
      %s19 = sadd.s32 %s12, 1
      %s21 = sadd.s32 %s20, 1
      %p24 = scmp.eq.s32.totalorder %s12, 1
      %p25 = scmp.ne.s32.totalorder %s20, %s22
      %p26 = scmp.eq.s32.totalorder %s12, 0
      %p27 = por %p25, %p26
      %p28 = scmp.ne.s32.totalorder %s20, %s22
      %p29 = scmp.eq.s32.totalorder %s17, 1
      %p30 = por %p28, %p29
      %p31 = scmp.ne.s32.totalorder %s22, %s23
      %p32 = scmp.eq.s32.totalorder %s17, 0
      %p33 = por %p31, %p32
      %p34 = scmp.ne.s32.totalorder %s22, %s23
      %p35 = scmp.eq.s32.totalorder %s18, 1
      %p36 = por %p34, %p35
      %p38 = scmp.ne.s32.totalorder %s23, %s37
      %p39 = scmp.eq.s32.totalorder %s18, 0
      %p40 = por %p38, %p39
      %s41 = ssub.s32 %s12, %s19
      %p42 = scmp.eq.s32.totalorder %s41, 0
      %s44 = sadd.s32 %s43, 1
      %s45 = scalar_select %p42, %s43, %s44
      %p48 = pneg %p42
      %p49 = scmp.eq.s32.totalorder %s12, 1
      %p50 = por %p48, %p49
      %p51 = scmp.ne.s32.totalorder %s43, %s46
      %p52 = scmp.eq.s32.totalorder %s12, 0
      %p53 = por %p51, %p52
      %p54 = scmp.ne.s32.totalorder %s43, %s46
      %p55 = scmp.eq.s32.totalorder %s17, 1
      %p56 = por %p54, %p55
      %p57 = scmp.ne.s32.totalorder %s46, %s47
      %p58 = scmp.eq.s32.totalorder %s17, 0
      %p59 = por %p57, %p58
      %p60 = scmp.ne.s32.totalorder %s46, %s47
      %p61 = scmp.eq.s32.totalorder %s18, 1
      %p62 = por %p60, %p61
      %p64 = scmp.ne.s32.totalorder %s47, %s63
      %p65 = scmp.eq.s32.totalorder %s18, 0
      %p66 = por %p64, %p65
      %s67 = ssub.s32 %s12, %s19
      %p68 = scmp.eq.s32.totalorder %s67, 0
      %s70 = sadd.s32 %s69, 1
      %s71 = scalar_select %p68, %s69, %s70
      %p74 = pneg %p68
      %p75 = scmp.eq.s32.totalorder %s12, 1
      %p76 = por %p74, %p75
      %p77 = scmp.ne.s32.totalorder %s69, %s72
      %p78 = scmp.eq.s32.totalorder %s12, 0
      %p79 = por %p77, %p78
      %p80 = scmp.ne.s32.totalorder %s69, %s72
      %p81 = scmp.eq.s32.totalorder %s17, 1
      %p82 = por %p80, %p81
      %p83 = scmp.ne.s32.totalorder %s72, %s73
      %p84 = scmp.eq.s32.totalorder %s17, 0
      %p85 = por %p83, %p84
      %p86 = scmp.ne.s32.totalorder %s72, %s73
      %p87 = scmp.eq.s32.totalorder %s18, 1
      %p88 = por %p86, %p87
      %p90 = scmp.ne.s32.totalorder %s73, %s89
      %p91 = scmp.eq.s32.totalorder %s18, 0
      %p92 = por %p90, %p91
      %p93 = scmp.le.s32.totalorder 1, %s12
      %p94 = scmp.lt.s32.totalorder %s12, 3
      %p95 = pnand %p93, %p94
      %p96 = pneg %p95
      // Predicated region
      $region9: #{tpu_custom_call.1} parent=5 // pred_check
        _
      $region10: #{tpu_custom_call.1} parent=5 // pred_check_branch
        %98 = sbr.rel (%p95) target = $region12
      $region11: #{tpu_custom_call.1} parent=5 // pred_region
        %s99 = ssub.s32 %s12, 1
        // Predicated region
        $region13: #{tpu_custom_call.1} parent=11 // pred_check
          %p100 = pneg %p33
        $region14: #{tpu_custom_call.1} parent=11 // pred_check_branch
          %102 = sbr.rel (%p100) target = $region16
        $region15: #{tpu_custom_call.1} parent=11 // pred_region
          %104 = vsyncadd [#allocation5], 0
          %s106 = sshll.u32 %s0, 4
          %s107 = int_to_ptr.hbm [resolvable:$true] %s106
          %s108 = sshll.u32 [#allocation4], 4
          %s109 = int_to_ptr.vmem [resolvable:$true] %s108
          %111 = dma.hbm_to_vmem [thread:$0]  %s107, 128, %s109, [#allocation5]
        $region16: #{tpu_custom_call.1} parent=11 // pred_fallthru
          _
      $region12: #{tpu_custom_call.1} parent=5 // pred_fallthru
        _
      %p112 = scmp.lt.s32.totalorder %s12, 2
      // Predicated region
      $region17: #{tpu_custom_call.1} parent=5 // pred_check
        %p113 = pneg %p112
      $region18: #{tpu_custom_call.1} parent=5 // pred_check_branch
        %115 = sbr.rel (%p113) target = $region20
      $region19: #{tpu_custom_call.1} parent=5 // pred_region
        // Predicated region
        $region21: #{tpu_custom_call.1} parent=19 // pred_check
          %p116 = pneg %p53
        $region22: #{tpu_custom_call.1} parent=19 // pred_check_branch
          %118 = sbr.rel (%p116) target = $region24
        $region23: #{tpu_custom_call.1} parent=19 // pred_region
          %s119 = sand.u32 %s43, 1
          %s120 = scalar_lea.sflag [#allocation7], %s119
          %s121 = sand.u32 %s43, 1
          %s122 = smul.addr %s121, 12
          %s123 = scalar_lea.vmem [#allocation6], %s122
          %125 = vsyncadd %s120, 0
          %s126 = smul.addr %s12, 3
          %s127 = smul.addr %s126, 4
          %s128 = scalar_lea.hbm %s1, %s127
          %s130 = sshll.u32 %s128, 4
          %s131 = int_to_ptr.hbm [resolvable:$true] %s130
          %s132 = sshll.u32 %s123, 4
          %s133 = int_to_ptr.vmem [resolvable:$true] %s132
          %135 = dma.hbm_to_vmem [thread:$0]  %s131, 192, %s133, %s120
        $region24: #{tpu_custom_call.1} parent=19 // pred_fallthru
          _
      $region20: #{tpu_custom_call.1} parent=5 // pred_fallthru
        _
      %p136 = scmp.le.s32.totalorder 1, %s12
      %p137 = scmp.lt.s32.totalorder %s12, 3
      %p138 = pnand %p136, %p137
      %p139 = pneg %p138
      // Predicated region
      $region25: #{tpu_custom_call.1} parent=5 // pred_check
        _
      $region26: #{tpu_custom_call.1} parent=5 // pred_check_branch
        %141 = sbr.rel (%p138) target = $region28
      $region27: #{tpu_custom_call.1} parent=5 // pred_region
        %s142 = ssub.s32 %s12, 1
        // Predicated region
        $region29: #{tpu_custom_call.1} parent=27 // pred_check
          %p143 = pneg %p33
        $region30: #{tpu_custom_call.1} parent=27 // pred_check_branch
          %145 = sbr.rel (%p143) target = $region32
        $region31: #{tpu_custom_call.1} parent=27 // pred_region
          %147 = dma.done [#allocation5], 128
        $region32: #{tpu_custom_call.1} parent=27 // pred_fallthru
          _
        %s148 = sand.u32 %s46, 1
        %s149 = scalar_lea.sflag [#allocation7], %s148
        %s150 = sand.u32 %s46, 1
        %s151 = smul.addr %s150, 12
        %s152 = scalar_lea.vmem [#allocation6], %s151
        // Predicated region
        $region33: #{tpu_custom_call.1} parent=27 // pred_check
          %p153 = pneg %p59
        $region34: #{tpu_custom_call.1} parent=27 // pred_check_branch
          %155 = sbr.rel (%p153) target = $region36
        $region35: #{tpu_custom_call.1} parent=27 // pred_region
          %157 = dma.done %s149, 192
        $region36: #{tpu_custom_call.1} parent=27 // pred_fallthru
          _
        %p158 = pneg %p33
        %p159 = pneg %p30
        %s160 = sand.u32 %s46, 1
        %s161 = scalar_lea.sflag [#allocation7], %s160
        %s162 = sand.u32 %s46, 1
        %s163 = smul.addr %s162, 12
        %s164 = scalar_lea.vmem [#allocation6], %s163
        %p165 = pneg %p59
        %p166 = pneg %p56
        %p167 = pneg %p85
        %p168 = pneg %p82
        %p169 = scmp.lt.s32.totalorder %s17, 1
        %s170 = scalar_select %p169, %s17, 1
        %s171 = smul.addr %s170, 3
        %s172 = smul.addr %s171, 8
        %s173 = scalar_lea.vmem %s2, %s172
        %p174 = scmp.lt.s32.totalorder %s17, 1
        %s175 = scalar_select %p174, %s17, 1
        %s176 = smul.addr %s175, 3
        %s177 = smul.addr %s176, 8
        %s178 = scalar_lea.vmem %s2, %s177
        %179 = vst [vmem:[#allocation2] sm:$0xff] 0.0
        %180 = vst [vmem:[#allocation2 + $0x8] sm:$0xff] 0.0
        %v181 = vld [vmem:[%s152] sm:$0xff]
        %v182 = vld [vmem:[%s152 + $0x8] sm:$0xf]
        %185 = vrot.lane.b32.xlu0 %v181, 40
        %v186 = vpop.permute.xlu0 %185
        %187 = vrot.lane.b32.xlu0 %v182, 40
        %v188 = vpop.permute.xlu0 %187
        %v189 = vrot.slane %v186, 4
        %vm190 = vcmask 326656
        %v191 = vsel %vm190, %v189, %v186
        %v192 = vsel %vm190, %v189, %v188
        %vm195 = vcmask 1043776
        %vm196 = vcmask 1047556
        %vm197 = vmor %vm196, %vm195
        %198 = vst.msk [vmem:[#allocation2] sm:$0xff] %vm197, %v191
        %vm199 = vcmask 846848
        %200 = vst.msk [vmem:[#allocation2 + $0x8] sm:$0xf] %vm199, %v192
        %v201 = vld [vmem:[#allocation2] sm:$0xff]
        %v202 = vld [vmem:[#allocation2 + $0x8] sm:$0xf]
        %205 = vst [vmem:[#allocation1] ss:$2 sm:$0xff] %v201
        %s206 = scalar_lea.vmem [#allocation1], 16
        %207 = vst [vmem:[%s206] ss:$2 sm:$0xff] %v202
        %v208 = vld.sshfl [vmem:[#allocation1] sm:$0xff pattern:$0x75316420]
        %v209 = vld.sshfl [vmem:[#allocation1 + $0x8] sm:$0xff pattern:$0x75316420]
        %v210 = vld.sshfl [vmem:[#allocation1 + $0x10] sm:$0xff pattern:$0x75316420]
        %214 = vst [vmem:[#allocation3] sm:$0xf] %v208
        %215 = vst [vmem:[#allocation3 + $0x8] sm:$0xf] %v209
        %216 = vst [vmem:[#allocation3 + $0x10] sm:$0xf] %v210
        %v217 = vld [vmem:[#allocation2] sm:$0xff]
        %v218 = vld [vmem:[#allocation2 + $0x8] sm:$0xff]
        %s221 = scalar_lea.vmem [#allocation1], 1
        %222 = vst [vmem:[%s221] ss:$2 sm:$0xff] %v217
        %s223 = scalar_lea.vmem [#allocation1], 17
        %224 = vst [vmem:[%s223] ss:$2 sm:$0xff] %v218
        %v225 = vld.sshfl [vmem:[#allocation1] sm:$0xff pattern:$0x75316420]
        %v226 = vld.sshfl [vmem:[#allocation1 + $0x8] sm:$0xff pattern:$0x75316420]
        %v227 = vld.sshfl [vmem:[#allocation1 + $0x10] sm:$0xff pattern:$0x75316420]
        %v228 = vld.sshfl [vmem:[#allocation1 + $0x18] sm:$0xff pattern:$0x75316420]
        %229 = vrot.lane.b32.xlu0 %v225, 127
        %v230 = vpop.permute.xlu0 %229
        %231 = vrot.lane.b32.xlu0 %v226, 127
        %v232 = vpop.permute.xlu0 %231
        %233 = vrot.lane.b32.xlu0 %v227, 127
        %v234 = vpop.permute.xlu0 %233
        %235 = vrot.lane.b32.xlu0 %v228, 127
        %v236 = vpop.permute.xlu0 %235
        %vm237 = vcmask 1039360
        %v238 = vsel %vm237, %v230, %v232
        %v239 = vsel %vm237, %v232, %v234
        %v240 = vsel %vm237, %v234, %v236
        %244 = vst [vmem:[#allocation3] sm:$0xf0] %v238
        %245 = vst [vmem:[#allocation3 + $0x8] sm:$0xf0] %v239
        %246 = vst [vmem:[#allocation3 + $0x10] sm:$0xf0] %v240
        %v247 = vld [vmem:[#allocation2] sm:$0xff]
        %v248 = vld [vmem:[#allocation2 + $0x8] sm:$0xff]
        %251 = vst [vmem:[#allocation1] ss:$2 sm:$0xff] %v247
        %s252 = scalar_lea.vmem [#allocation1], 16
        %253 = vst [vmem:[%s252] ss:$2 sm:$0xff] %v248
        %v254 = vld.sshfl [vmem:[#allocation1] sm:$0xff pattern:$0x75316420]
        %v255 = vld.sshfl [vmem:[#allocation1 + $0x8] sm:$0xff pattern:$0x75316420]
        %v256 = vld.sshfl [vmem:[#allocation1 + $0x10] sm:$0xff pattern:$0x75316420]
        %v257 = vld.sshfl [vmem:[#allocation1 + $0x18] sm:$0xff pattern:$0x75316420]
        %258 = vrot.lane.b32.xlu0 %v254, 126
        %v259 = vpop.permute.xlu0 %258
        %260 = vrot.lane.b32.xlu0 %v255, 126
        %v261 = vpop.permute.xlu0 %260
        %262 = vrot.lane.b32.xlu0 %v256, 126
        %v263 = vpop.permute.xlu0 %262
        %264 = vrot.lane.b32.xlu0 %v257, 126
        %v265 = vpop.permute.xlu0 %264
        %vm266 = vcmask 1031168
        %v267 = vsel %vm266, %v259, %v261
        %v268 = vsel %vm266, %v261, %v263
        %v269 = vsel %vm266, %v263, %v265
        %273 = vst [vmem:[#allocation3 + $0x18] sm:$0xf] %v267
        %274 = vst [vmem:[#allocation3 + $0x20] sm:$0xf] %v268
        %275 = vst [vmem:[#allocation3 + $0x28] sm:$0xf] %v269
        %v276 = vld [vmem:[#allocation2] sm:$0xff]
        %v277 = vld [vmem:[#allocation2 + $0x8] sm:$0xff]
        %s280 = scalar_lea.vmem [#allocation1], 1
        %281 = vst [vmem:[%s280] ss:$2 sm:$0xff] %v276
        %s282 = scalar_lea.vmem [#allocation1], 17
        %283 = vst [vmem:[%s282] ss:$2 sm:$0xff] %v277
        %v284 = vld.sshfl [vmem:[#allocation1] sm:$0xff pattern:$0x75316420]
        %v285 = vld.sshfl [vmem:[#allocation1 + $0x8] sm:$0xff pattern:$0x75316420]
        %v286 = vld.sshfl [vmem:[#allocation1 + $0x10] sm:$0xff pattern:$0x75316420]
        %v287 = vld.sshfl [vmem:[#allocation1 + $0x18] sm:$0xff pattern:$0x75316420]
        %288 = vrot.lane.b32.xlu0 %v284, 125
        %v289 = vpop.permute.xlu0 %288
        %290 = vrot.lane.b32.xlu0 %v285, 125
        %v291 = vpop.permute.xlu0 %290
        %292 = vrot.lane.b32.xlu0 %v286, 125
        %v293 = vpop.permute.xlu0 %292
        %294 = vrot.lane.b32.xlu0 %v287, 125
        %v295 = vpop.permute.xlu0 %294
        %vm296 = vcmask 1022976
        %v297 = vsel %vm296, %v289, %v291
        %v298 = vsel %vm296, %v291, %v293
        %v299 = vsel %vm296, %v293, %v295
        %303 = vst [vmem:[#allocation3 + $0x18] sm:$0xf0] %v297
        %304 = vst [vmem:[#allocation3 + $0x20] sm:$0xf0] %v298
        %305 = vst [vmem:[#allocation3 + $0x28] sm:$0xf0] %v299
        %v306 = vld [vmem:[#allocation2] sm:$0xff]
        %v307 = vld [vmem:[#allocation2 + $0x8] sm:$0xff]
        %310 = vst [vmem:[#allocation1] ss:$2 sm:$0xff] %v306
        %s311 = scalar_lea.vmem [#allocation1], 16
        %312 = vst [vmem:[%s311] ss:$2 sm:$0xff] %v307
        %v313 = vld.sshfl [vmem:[#allocation1] sm:$0xff pattern:$0x75316420]
        %v314 = vld.sshfl [vmem:[#allocation1 + $0x8] sm:$0xff pattern:$0x75316420]
        %v315 = vld.sshfl [vmem:[#allocation1 + $0x10] sm:$0xff pattern:$0x75316420]
        %v316 = vld.sshfl [vmem:[#allocation1 + $0x18] sm:$0xff pattern:$0x75316420]
        %317 = vrot.lane.b32.xlu0 %v313, 124
        %v318 = vpop.permute.xlu0 %317
        %319 = vrot.lane.b32.xlu0 %v314, 124
        %v320 = vpop.permute.xlu0 %319
        %321 = vrot.lane.b32.xlu0 %v315, 124
        %v322 = vpop.permute.xlu0 %321
        %323 = vrot.lane.b32.xlu0 %v316, 124
        %v324 = vpop.permute.xlu0 %323
        %vm325 = vcmask 1014784
        %v326 = vsel %vm325, %v318, %v320
        %v327 = vsel %vm325, %v320, %v322
        %v328 = vsel %vm325, %v322, %v324
        %332 = vst [vmem:[#allocation3 + $0x30] sm:$0xf] %v326
        %333 = vst [vmem:[#allocation3 + $0x38] sm:$0xf] %v327
        %334 = vst [vmem:[#allocation3 + $0x40] sm:$0xf] %v328
        %v335 = vld [vmem:[#allocation2] sm:$0xff]
        %v336 = vld [vmem:[#allocation2 + $0x8] sm:$0xff]
        %s339 = scalar_lea.vmem [#allocation1], 1
        %340 = vst [vmem:[%s339] ss:$2 sm:$0xff] %v335
        %s341 = scalar_lea.vmem [#allocation1], 17
        %342 = vst [vmem:[%s341] ss:$2 sm:$0xff] %v336
        %v343 = vld.sshfl [vmem:[#allocation1] sm:$0xff pattern:$0x75316420]
        %v344 = vld.sshfl [vmem:[#allocation1 + $0x8] sm:$0xff pattern:$0x75316420]
        %v345 = vld.sshfl [vmem:[#allocation1 + $0x10] sm:$0xff pattern:$0x75316420]
        %v346 = vld.sshfl [vmem:[#allocation1 + $0x18] sm:$0xff pattern:$0x75316420]
        %347 = vrot.lane.b32.xlu0 %v343, 108
        %v348 = vpop.permute.xlu0 %347
        %349 = vrot.lane.b32.xlu0 %v344, 108
        %v350 = vpop.permute.xlu0 %349
        %351 = vrot.lane.b32.xlu0 %v345, 108
        %v352 = vpop.permute.xlu0 %351
        %353 = vrot.lane.b32.xlu0 %v346, 108
        %v354 = vpop.permute.xlu0 %353
        %vm355 = vcmask 883712
        %v356 = vsel %vm355, %v348, %v350
        %v357 = vsel %vm355, %v350, %v352
        %v358 = vsel %vm355, %v352, %v354
        %362 = vst [vmem:[#allocation3 + $0x30] sm:$0xf0] %v356
        %363 = vst [vmem:[#allocation3 + $0x38] sm:$0xf0] %v357
        %364 = vst [vmem:[#allocation3 + $0x40] sm:$0xf0] %v358
        %v365 = vld [vmem:[#allocation2] sm:$0xff]
        %v366 = vld [vmem:[#allocation2 + $0x8] sm:$0xff]
        %369 = vst [vmem:[#allocation1] ss:$2 sm:$0xff] %v365
        %s370 = scalar_lea.vmem [#allocation1], 16
        %371 = vst [vmem:[%s370] ss:$2 sm:$0xff] %v366
        %v372 = vld.sshfl [vmem:[#allocation1] sm:$0xff pattern:$0x75316420]
        %v373 = vld.sshfl [vmem:[#allocation1 + $0x8] sm:$0xff pattern:$0x75316420]
        %v374 = vld.sshfl [vmem:[#allocation1 + $0x10] sm:$0xff pattern:$0x75316420]
        %v375 = vld.sshfl [vmem:[#allocation1 + $0x18] sm:$0xff pattern:$0x75316420]
        %376 = vrot.lane.b32.xlu0 %v372, 107
        %v377 = vpop.permute.xlu0 %376
        %378 = vrot.lane.b32.xlu0 %v373, 107
        %v379 = vpop.permute.xlu0 %378
        %380 = vrot.lane.b32.xlu0 %v374, 107
        %v381 = vpop.permute.xlu0 %380
        %382 = vrot.lane.b32.xlu0 %v375, 107
        %v383 = vpop.permute.xlu0 %382
        %vm384 = vcmask 875520
        %v385 = vsel %vm384, %v377, %v379
        %v386 = vsel %vm384, %v379, %v381
        %v387 = vsel %vm384, %v381, %v383
        %391 = vst [vmem:[#allocation3 + $0x48] sm:$0xf] %v385
        %392 = vst [vmem:[#allocation3 + $0x50] sm:$0xf] %v386
        %393 = vst [vmem:[#allocation3 + $0x58] sm:$0xf] %v387
        %v394 = vld [vmem:[#allocation2] sm:$0xff]
        %v395 = vld [vmem:[#allocation2 + $0x8] sm:$0xff]
        %s398 = scalar_lea.vmem [#allocation1], 1
        %399 = vst [vmem:[%s398] ss:$2 sm:$0xff] %v394
        %s400 = scalar_lea.vmem [#allocation1], 17
        %401 = vst [vmem:[%s400] ss:$2 sm:$0xff] %v395
        %v402 = vld.sshfl [vmem:[#allocation1] sm:$0xff pattern:$0x75316420]
        %v403 = vld.sshfl [vmem:[#allocation1 + $0x8] sm:$0xff pattern:$0x75316420]
        %v404 = vld.sshfl [vmem:[#allocation1 + $0x10] sm:$0xff pattern:$0x75316420]
        %v405 = vld.sshfl [vmem:[#allocation1 + $0x18] sm:$0xff pattern:$0x75316420]
        %406 = vrot.lane.b32.xlu0 %v402, 106
        %v407 = vpop.permute.xlu0 %406
        %408 = vrot.lane.b32.xlu0 %v403, 106
        %v409 = vpop.permute.xlu0 %408
        %410 = vrot.lane.b32.xlu0 %v404, 106
        %v411 = vpop.permute.xlu0 %410
        %412 = vrot.lane.b32.xlu0 %v405, 106
        %v413 = vpop.permute.xlu0 %412
        %vm414 = vcmask 867328
        %v415 = vsel %vm414, %v407, %v409
        %v416 = vsel %vm414, %v409, %v411
        %v417 = vsel %vm414, %v411, %v413
        %421 = vst [vmem:[#allocation3 + $0x48] sm:$0xf0] %v415
        %422 = vst [vmem:[#allocation3 + $0x50] sm:$0xf0] %v416
        %423 = vst [vmem:[#allocation3 + $0x58] sm:$0xf0] %v417
        %v424 = vld [vmem:[#allocation2] sm:$0xff]
        %v425 = vld [vmem:[#allocation2 + $0x8] sm:$0xff]
        %428 = vst [vmem:[#allocation1] ss:$2 sm:$0xff] %v424
        %s429 = scalar_lea.vmem [#allocation1], 16
        %430 = vst [vmem:[%s429] ss:$2 sm:$0xff] %v425
        %v431 = vld.sshfl [vmem:[#allocation1] sm:$0xff pattern:$0x75316420]
        %v432 = vld.sshfl [vmem:[#allocation1 + $0x8] sm:$0xff pattern:$0x75316420]
        %v433 = vld.sshfl [vmem:[#allocation1 + $0x10] sm:$0xff pattern:$0x75316420]
        %v434 = vld.sshfl [vmem:[#allocation1 + $0x18] sm:$0xff pattern:$0x75316420]
        %435 = vrot.lane.b32.xlu0 %v431, 105
        %v436 = vpop.permute.xlu0 %435
        %437 = vrot.lane.b32.xlu0 %v432, 105
        %v438 = vpop.permute.xlu0 %437
        %439 = vrot.lane.b32.xlu0 %v433, 105
        %v440 = vpop.permute.xlu0 %439
        %441 = vrot.lane.b32.xlu0 %v434, 105
        %v442 = vpop.permute.xlu0 %441
        %vm443 = vcmask 859136
        %v444 = vsel %vm443, %v436, %v438
        %v445 = vsel %vm443, %v438, %v440
        %v446 = vsel %vm443, %v440, %v442
        %450 = vst [vmem:[#allocation3 + $0x60] sm:$0xf] %v444
        %451 = vst [vmem:[#allocation3 + $0x68] sm:$0xf] %v445
        %452 = vst [vmem:[#allocation3 + $0x70] sm:$0xf] %v446
        %v453 = vld [vmem:[#allocation2] sm:$0xff]
        %v454 = vld [vmem:[#allocation2 + $0x8] sm:$0xff]
        %s457 = scalar_lea.vmem [#allocation1], 1
        %458 = vst [vmem:[%s457] ss:$2 sm:$0xff] %v453
        %s459 = scalar_lea.vmem [#allocation1], 17
        %460 = vst [vmem:[%s459] ss:$2 sm:$0xff] %v454
        %v461 = vld.sshfl [vmem:[#allocation1] sm:$0xff pattern:$0x75316420]
        %v462 = vld.sshfl [vmem:[#allocation1 + $0x8] sm:$0xff pattern:$0x75316420]
        %v463 = vld.sshfl [vmem:[#allocation1 + $0x10] sm:$0xff pattern:$0x75316420]
        %v464 = vld.sshfl [vmem:[#allocation1 + $0x18] sm:$0xff pattern:$0x75316420]
        %465 = vrot.lane.b32.xlu0 %v461, 104
        %v466 = vpop.permute.xlu0 %465
        %467 = vrot.lane.b32.xlu0 %v462, 104
        %v468 = vpop.permute.xlu0 %467
        %469 = vrot.lane.b32.xlu0 %v463, 104
        %v470 = vpop.permute.xlu0 %469
        %471 = vrot.lane.b32.xlu0 %v464, 104
        %v472 = vpop.permute.xlu0 %471
        %vm473 = vcmask 850944
        %v474 = vsel %vm473, %v466, %v468
        %v475 = vsel %vm473, %v468, %v470
        %v476 = vsel %vm473, %v470, %v472
        %480 = vst [vmem:[#allocation3 + $0x60] sm:$0xf0] %v474
        %481 = vst [vmem:[#allocation3 + $0x68] sm:$0xf0] %v475
        %482 = vst [vmem:[#allocation3 + $0x70] sm:$0xf0] %v476
        %v483 = vld [vmem:[#allocation2] sm:$0xff]
        %v484 = vld [vmem:[#allocation2 + $0x8] sm:$0xff]
        %487 = vst [vmem:[#allocation1] ss:$2 sm:$0xff] %v483
        %s488 = scalar_lea.vmem [#allocation1], 16
        %489 = vst [vmem:[%s488] ss:$2 sm:$0xff] %v484
        %v490 = vld.sshfl [vmem:[#allocation1] sm:$0xff pattern:$0x75316420]
        %v491 = vld.sshfl [vmem:[#allocation1 + $0x8] sm:$0xff pattern:$0x75316420]
        %v492 = vld.sshfl [vmem:[#allocation1 + $0x10] sm:$0xff pattern:$0x75316420]
        %v493 = vld.sshfl [vmem:[#allocation1 + $0x18] sm:$0xff pattern:$0x75316420]
        %494 = vrot.lane.b32.xlu0 %v490, 88
        %v495 = vpop.permute.xlu0 %494
        %496 = vrot.lane.b32.xlu0 %v491, 88
        %v497 = vpop.permute.xlu0 %496
        %498 = vrot.lane.b32.xlu0 %v492, 88
        %v499 = vpop.permute.xlu0 %498
        %500 = vrot.lane.b32.xlu0 %v493, 88
        %v501 = vpop.permute.xlu0 %500
        %vm502 = vcmask 719872
        %v503 = vsel %vm502, %v495, %v497
        %v504 = vsel %vm502, %v497, %v499
        %v505 = vsel %vm502, %v499, %v501
        %509 = vst [vmem:[#allocation3 + $0x78] sm:$0xf] %v503
        %510 = vst [vmem:[#allocation3 + $0x80] sm:$0xf] %v504
        %511 = vst [vmem:[#allocation3 + $0x88] sm:$0xf] %v505
        %v512 = vld [vmem:[#allocation2] sm:$0xff]
        %v513 = vld [vmem:[#allocation2 + $0x8] sm:$0xff]
        %s516 = scalar_lea.vmem [#allocation1], 1
        %517 = vst [vmem:[%s516] ss:$2 sm:$0xff] %v512
        %s518 = scalar_lea.vmem [#allocation1], 17
        %519 = vst [vmem:[%s518] ss:$2 sm:$0xff] %v513
        %v520 = vld.sshfl [vmem:[#allocation1] sm:$0xff pattern:$0x75316420]
        %v521 = vld.sshfl [vmem:[#allocation1 + $0x8] sm:$0xff pattern:$0x75316420]
        %v522 = vld.sshfl [vmem:[#allocation1 + $0x10] sm:$0xff pattern:$0x75316420]
        %v523 = vld.sshfl [vmem:[#allocation1 + $0x18] sm:$0xff pattern:$0x75316420]
        %524 = vrot.lane.b32.xlu0 %v520, 87
        %v525 = vpop.permute.xlu0 %524
        %526 = vrot.lane.b32.xlu0 %v521, 87
        %v527 = vpop.permute.xlu0 %526
        %528 = vrot.lane.b32.xlu0 %v522, 87
        %v529 = vpop.permute.xlu0 %528
        %530 = vrot.lane.b32.xlu0 %v523, 87
        %v531 = vpop.permute.xlu0 %530
        %vm532 = vcmask 711680
        %v533 = vsel %vm532, %v525, %v527
        %v534 = vsel %vm532, %v527, %v529
        %v535 = vsel %vm532, %v529, %v531
        %539 = vst [vmem:[#allocation3 + $0x78] sm:$0xf0] %v533
        %540 = vst [vmem:[#allocation3 + $0x80] sm:$0xf0] %v534
        %541 = vst [vmem:[#allocation3 + $0x88] sm:$0xf0] %v535
        %v542 = vld [vmem:[#allocation2] sm:$0xff]
        %v543 = vld [vmem:[#allocation2 + $0x8] sm:$0xff]
        %546 = vst [vmem:[#allocation1] ss:$2 sm:$0xff] %v542
        %s547 = scalar_lea.vmem [#allocation1], 16
        %548 = vst [vmem:[%s547] ss:$2 sm:$0xff] %v543
        %v549 = vld.sshfl [vmem:[#allocation1] sm:$0xff pattern:$0x75316420]
        %v550 = vld.sshfl [vmem:[#allocation1 + $0x8] sm:$0xff pattern:$0x75316420]
        %v551 = vld.sshfl [vmem:[#allocation1 + $0x10] sm:$0xff pattern:$0x75316420]
        %v552 = vld.sshfl [vmem:[#allocation1 + $0x18] sm:$0xff pattern:$0x75316420]
        %553 = vrot.lane.b32.xlu0 %v549, 86
        %v554 = vpop.permute.xlu0 %553
        %555 = vrot.lane.b32.xlu0 %v550, 86
        %v556 = vpop.permute.xlu0 %555
        %557 = vrot.lane.b32.xlu0 %v551, 86
        %v558 = vpop.permute.xlu0 %557
        %559 = vrot.lane.b32.xlu0 %v552, 86
        %v560 = vpop.permute.xlu0 %559
        %vm561 = vcmask 703488
        %v562 = vsel %vm561, %v554, %v556
        %v563 = vsel %vm561, %v556, %v558
        %v564 = vsel %vm561, %v558, %v560
        %568 = vst [vmem:[#allocation3 + $0x90] sm:$0xf] %v562
        %569 = vst [vmem:[#allocation3 + $0x98] sm:$0xf] %v563
        %570 = vst [vmem:[#allocation3 + $0xa0] sm:$0xf] %v564
        %v571 = vld [vmem:[#allocation2] sm:$0xff]
        %v572 = vld [vmem:[#allocation2 + $0x8] sm:$0xff]
        %s575 = scalar_lea.vmem [#allocation1], 1
        %576 = vst [vmem:[%s575] ss:$2 sm:$0xff] %v571
        %s577 = scalar_lea.vmem [#allocation1], 17
        %578 = vst [vmem:[%s577] ss:$2 sm:$0xff] %v572
        %v579 = vld.sshfl [vmem:[#allocation1] sm:$0xff pattern:$0x75316420]
        %v580 = vld.sshfl [vmem:[#allocation1 + $0x8] sm:$0xff pattern:$0x75316420]
        %v581 = vld.sshfl [vmem:[#allocation1 + $0x10] sm:$0xff pattern:$0x75316420]
        %v582 = vld.sshfl [vmem:[#allocation1 + $0x18] sm:$0xff pattern:$0x75316420]
        %583 = vrot.lane.b32.xlu0 %v579, 85
        %v584 = vpop.permute.xlu0 %583
        %585 = vrot.lane.b32.xlu0 %v580, 85
        %v586 = vpop.permute.xlu0 %585
        %587 = vrot.lane.b32.xlu0 %v581, 85
        %v588 = vpop.permute.xlu0 %587
        %589 = vrot.lane.b32.xlu0 %v582, 85
        %v590 = vpop.permute.xlu0 %589
        %vm591 = vcmask 695296
        %v592 = vsel %vm591, %v584, %v586
        %v593 = vsel %vm591, %v586, %v588
        %v594 = vsel %vm591, %v588, %v590
        %598 = vst [vmem:[#allocation3 + $0x90] sm:$0xf0] %v592
        %599 = vst [vmem:[#allocation3 + $0x98] sm:$0xf0] %v593
        %600 = vst [vmem:[#allocation3 + $0xa0] sm:$0xf0] %v594
        %v601 = vld [vmem:[#allocation2] sm:$0xff]
        %v602 = vld [vmem:[#allocation2 + $0x8] sm:$0xff]
        %605 = vst [vmem:[#allocation1] ss:$2 sm:$0xff] %v601
        %s606 = scalar_lea.vmem [#allocation1], 16
        %607 = vst [vmem:[%s606] ss:$2 sm:$0xff] %v602
        %v608 = vld.sshfl [vmem:[#allocation1] sm:$0xff pattern:$0x75316420]
        %v609 = vld.sshfl [vmem:[#allocation1 + $0x8] sm:$0xff pattern:$0x75316420]
        %v610 = vld.sshfl [vmem:[#allocation1 + $0x10] sm:$0xff pattern:$0x75316420]
        %v611 = vld.sshfl [vmem:[#allocation1 + $0x18] sm:$0xff pattern:$0x75316420]
        %612 = vrot.lane.b32.xlu0 %v608, 84
        %v613 = vpop.permute.xlu0 %612
        %614 = vrot.lane.b32.xlu0 %v609, 84
        %v615 = vpop.permute.xlu0 %614
        %616 = vrot.lane.b32.xlu0 %v610, 84
        %v617 = vpop.permute.xlu0 %616
        %618 = vrot.lane.b32.xlu0 %v611, 84
        %v619 = vpop.permute.xlu0 %618
        %vm620 = vcmask 687104
        %v621 = vsel %vm620, %v613, %v615
        %v622 = vsel %vm620, %v615, %v617
        %v623 = vsel %vm620, %v617, %v619
        %627 = vst [vmem:[#allocation3 + $0xa8] sm:$0xf] %v621
        %628 = vst [vmem:[#allocation3 + $0xb0] sm:$0xf] %v622
        %629 = vst [vmem:[#allocation3 + $0xb8] sm:$0xf] %v623
        %v630 = vld [vmem:[#allocation2] sm:$0xff]
        %v631 = vld [vmem:[#allocation2 + $0x8] sm:$0xff]
        %s634 = scalar_lea.vmem [#allocation1], 1
        %635 = vst [vmem:[%s634] ss:$2 sm:$0xff] %v630
        %s636 = scalar_lea.vmem [#allocation1], 17
        %637 = vst [vmem:[%s636] ss:$2 sm:$0xff] %v631
        %v638 = vld.sshfl [vmem:[#allocation1] sm:$0xff pattern:$0x75316420]
        %v639 = vld.sshfl [vmem:[#allocation1 + $0x8] sm:$0xff pattern:$0x75316420]
        %v640 = vld.sshfl [vmem:[#allocation1 + $0x10] sm:$0xff pattern:$0x75316420]
        %v641 = vld.sshfl [vmem:[#allocation1 + $0x18] sm:$0xff pattern:$0x75316420]
        %642 = vrot.lane.b32.xlu0 %v638, 68
        %v643 = vpop.permute.xlu0 %642
        %644 = vrot.lane.b32.xlu0 %v639, 68
        %v645 = vpop.permute.xlu0 %644
        %646 = vrot.lane.b32.xlu0 %v640, 68
        %v647 = vpop.permute.xlu0 %646
        %648 = vrot.lane.b32.xlu0 %v641, 68
        %v649 = vpop.permute.xlu0 %648
        %vm650 = vcmask 556032
        %v651 = vsel %vm650, %v643, %v645
        %v652 = vsel %vm650, %v645, %v647
        %v653 = vsel %vm650, %v647, %v649
        %657 = vst [vmem:[#allocation3 + $0xa8] sm:$0xf0] %v651
        %658 = vst [vmem:[#allocation3 + $0xb0] sm:$0xf0] %v652
        %659 = vst [vmem:[#allocation3 + $0xb8] sm:$0xf0] %v653
        %v660 = vld [vmem:[#allocation2] sm:$0xff]
        %v661 = vld [vmem:[#allocation2 + $0x8] sm:$0xff]
        %664 = vst [vmem:[#allocation1] ss:$2 sm:$0xff] %v660
        %s665 = scalar_lea.vmem [#allocation1], 16
        %666 = vst [vmem:[%s665] ss:$2 sm:$0xff] %v661
        %v667 = vld.sshfl [vmem:[#allocation1] sm:$0xff pattern:$0x75316420]
        %v668 = vld.sshfl [vmem:[#allocation1 + $0x8] sm:$0xff pattern:$0x75316420]
        %v669 = vld.sshfl [vmem:[#allocation1 + $0x10] sm:$0xff pattern:$0x75316420]
        %v670 = vld.sshfl [vmem:[#allocation1 + $0x18] sm:$0xff pattern:$0x75316420]
        %671 = vrot.lane.b32.xlu0 %v667, 67
        %v672 = vpop.permute.xlu0 %671
        %673 = vrot.lane.b32.xlu0 %v668, 67
        %v674 = vpop.permute.xlu0 %673
        %675 = vrot.lane.b32.xlu0 %v669, 67
        %v676 = vpop.permute.xlu0 %675
        %677 = vrot.lane.b32.xlu0 %v670, 67
        %v678 = vpop.permute.xlu0 %677
        %vm679 = vcmask 547840
        %v680 = vsel %vm679, %v672, %v674
        %v681 = vsel %vm679, %v674, %v676
        %v682 = vsel %vm679, %v676, %v678
        %686 = vst [vmem:[#allocation3 + $0xc0] sm:$0xf] %v680
        %687 = vst [vmem:[#allocation3 + $0xc8] sm:$0xf] %v681
        %688 = vst [vmem:[#allocation3 + $0xd0] sm:$0xf] %v682
        %v689 = vld [vmem:[#allocation2] sm:$0xff]
        %v690 = vld [vmem:[#allocation2 + $0x8] sm:$0xff]
        %s693 = scalar_lea.vmem [#allocation1], 1
        %694 = vst [vmem:[%s693] ss:$2 sm:$0xff] %v689
        %s695 = scalar_lea.vmem [#allocation1], 17
        %696 = vst [vmem:[%s695] ss:$2 sm:$0xff] %v690
        %v697 = vld.sshfl [vmem:[#allocation1] sm:$0xff pattern:$0x75316420]
        %v698 = vld.sshfl [vmem:[#allocation1 + $0x8] sm:$0xff pattern:$0x75316420]
        %v699 = vld.sshfl [vmem:[#allocation1 + $0x10] sm:$0xff pattern:$0x75316420]
        %v700 = vld.sshfl [vmem:[#allocation1 + $0x18] sm:$0xff pattern:$0x75316420]
        %701 = vrot.lane.b32.xlu0 %v697, 66
        %v702 = vpop.permute.xlu0 %701
        %703 = vrot.lane.b32.xlu0 %v698, 66
        %v704 = vpop.permute.xlu0 %703
        %705 = vrot.lane.b32.xlu0 %v699, 66
        %v706 = vpop.permute.xlu0 %705
        %707 = vrot.lane.b32.xlu0 %v700, 66
        %v708 = vpop.permute.xlu0 %707
        %vm709 = vcmask 539648
        %v710 = vsel %vm709, %v702, %v704
        %v711 = vsel %vm709, %v704, %v706
        %v712 = vsel %vm709, %v706, %v708
        %716 = vst [vmem:[#allocation3 + $0xc0] sm:$0xf0] %v710
        %717 = vst [vmem:[#allocation3 + $0xc8] sm:$0xf0] %v711
        %718 = vst [vmem:[#allocation3 + $0xd0] sm:$0xf0] %v712
        %v719 = vld [vmem:[#allocation2] sm:$0xff]
        %v720 = vld [vmem:[#allocation2 + $0x8] sm:$0xff]
        %723 = vst [vmem:[#allocation1] ss:$2 sm:$0xff] %v719
        %s724 = scalar_lea.vmem [#allocation1], 16
        %725 = vst [vmem:[%s724] ss:$2 sm:$0xff] %v720
        %v726 = vld.sshfl [vmem:[#allocation1] sm:$0xff pattern:$0x75316420]
        %v727 = vld.sshfl [vmem:[#allocation1 + $0x8] sm:$0xff pattern:$0x75316420]
        %v728 = vld.sshfl [vmem:[#allocation1 + $0x10] sm:$0xff pattern:$0x75316420]
        %v729 = vld.sshfl [vmem:[#allocation1 + $0x18] sm:$0xff pattern:$0x75316420]
        %730 = vrot.lane.b32.xlu0 %v726, 65
        %v731 = vpop.permute.xlu0 %730
        %732 = vrot.lane.b32.xlu0 %v727, 65
        %v733 = vpop.permute.xlu0 %732
        %734 = vrot.lane.b32.xlu0 %v728, 65
        %v735 = vpop.permute.xlu0 %734
        %736 = vrot.lane.b32.xlu0 %v729, 65
        %v737 = vpop.permute.xlu0 %736
        %vm738 = vcmask 531456
        %v739 = vsel %vm738, %v731, %v733
        %v740 = vsel %vm738, %v733, %v735
        %v741 = vsel %vm738, %v735, %v737
        %745 = vst [vmem:[#allocation3 + $0xd8] sm:$0xf] %v739
        %746 = vst [vmem:[#allocation3 + $0xe0] sm:$0xf] %v740
        %747 = vst [vmem:[#allocation3 + $0xe8] sm:$0xf] %v741
        %v748 = vld [vmem:[#allocation2] sm:$0xff]
        %v749 = vld [vmem:[#allocation2 + $0x8] sm:$0xff]
        %s752 = scalar_lea.vmem [#allocation1], 1
        %753 = vst [vmem:[%s752] ss:$2 sm:$0xff] %v748
        %s754 = scalar_lea.vmem [#allocation1], 17
        %755 = vst [vmem:[%s754] ss:$2 sm:$0xff] %v749
        %v756 = vld.sshfl [vmem:[#allocation1] sm:$0xff pattern:$0x75316420]
        %v757 = vld.sshfl [vmem:[#allocation1 + $0x8] sm:$0xff pattern:$0x75316420]
        %v758 = vld.sshfl [vmem:[#allocation1 + $0x10] sm:$0xff pattern:$0x75316420]
        %v759 = vld.sshfl [vmem:[#allocation1 + $0x18] sm:$0xff pattern:$0x75316420]
        %760 = vrot.lane.b32.xlu0 %v756, 64
        %v761 = vpop.permute.xlu0 %760
        %762 = vrot.lane.b32.xlu0 %v757, 64
        %v763 = vpop.permute.xlu0 %762
        %764 = vrot.lane.b32.xlu0 %v758, 64
        %v765 = vpop.permute.xlu0 %764
        %766 = vrot.lane.b32.xlu0 %v759, 64
        %v767 = vpop.permute.xlu0 %766
        %vm768 = vcmask 523264
        %v769 = vsel %vm768, %v761, %v763
        %v770 = vsel %vm768, %v763, %v765
        %v771 = vsel %vm768, %v765, %v767
        %775 = vst [vmem:[#allocation3 + $0xd8] sm:$0xf0] %v769
        %776 = vst [vmem:[#allocation3 + $0xe0] sm:$0xf0] %v770
        %777 = vst [vmem:[#allocation3 + $0xe8] sm:$0xf0] %v771
        %v778 = vld [vmem:[#allocation2] sm:$0xff]
        %v779 = vld [vmem:[#allocation2 + $0x8] sm:$0xff]
        %782 = vst [vmem:[#allocation1] ss:$2 sm:$0xff] %v778
        %s783 = scalar_lea.vmem [#allocation1], 16
        %784 = vst [vmem:[%s783] ss:$2 sm:$0xff] %v779
        %v785 = vld.sshfl [vmem:[#allocation1] sm:$0xff pattern:$0x75316420]
        %v786 = vld.sshfl [vmem:[#allocation1 + $0x8] sm:$0xff pattern:$0x75316420]
        %v787 = vld.sshfl [vmem:[#allocation1 + $0x10] sm:$0xff pattern:$0x75316420]
        %v788 = vld.sshfl [vmem:[#allocation1 + $0x18] sm:$0xff pattern:$0x75316420]
        %789 = vrot.lane.b32.xlu0 %v785, 48
        %v790 = vpop.permute.xlu0 %789
        %791 = vrot.lane.b32.xlu0 %v786, 48
        %v792 = vpop.permute.xlu0 %791
        %793 = vrot.lane.b32.xlu0 %v787, 48
        %v794 = vpop.permute.xlu0 %793
        %795 = vrot.lane.b32.xlu0 %v788, 48
        %v796 = vpop.permute.xlu0 %795
        %vm797 = vcmask 392192
        %v798 = vsel %vm797, %v790, %v792
        %v799 = vsel %vm797, %v792, %v794
        %v800 = vsel %vm797, %v794, %v796
        %804 = vst [vmem:[#allocation3 + $0xf0] sm:$0xf] %v798
        %805 = vst [vmem:[#allocation3 + $0xf8] sm:$0xf] %v799
        %806 = vst [vmem:[#allocation3 + $0x100] sm:$0xf] %v800
        %v807 = vld [vmem:[#allocation2] sm:$0xff]
        %v808 = vld [vmem:[#allocation2 + $0x8] sm:$0xff]
        %s811 = scalar_lea.vmem [#allocation1], 1
        %812 = vst [vmem:[%s811] ss:$2 sm:$0xff] %v807
        %s813 = scalar_lea.vmem [#allocation1], 17
        %814 = vst [vmem:[%s813] ss:$2 sm:$0xff] %v808
        %v815 = vld.sshfl [vmem:[#allocation1] sm:$0xff pattern:$0x75316420]
        %v816 = vld.sshfl [vmem:[#allocation1 + $0x8] sm:$0xff pattern:$0x75316420]
        %v817 = vld.sshfl [vmem:[#allocation1 + $0x10] sm:$0xff pattern:$0x75316420]
        %v818 = vld.sshfl [vmem:[#allocation1 + $0x18] sm:$0xff pattern:$0x75316420]
        %819 = vrot.lane.b32.xlu0 %v815, 47
        %v820 = vpop.permute.xlu0 %819
        %821 = vrot.lane.b32.xlu0 %v816, 47
        %v822 = vpop.permute.xlu0 %821
        %823 = vrot.lane.b32.xlu0 %v817, 47
        %v824 = vpop.permute.xlu0 %823
        %825 = vrot.lane.b32.xlu0 %v818, 47
        %v826 = vpop.permute.xlu0 %825
        %vm827 = vcmask 384000
        %v828 = vsel %vm827, %v820, %v822
        %v829 = vsel %vm827, %v822, %v824
        %v830 = vsel %vm827, %v824, %v826
        %834 = vst [vmem:[#allocation3 + $0xf0] sm:$0xf0] %v828
        %835 = vst [vmem:[#allocation3 + $0xf8] sm:$0xf0] %v829
        %836 = vst [vmem:[#allocation3 + $0x100] sm:$0xf0] %v830
        %v837 = vld [vmem:[#allocation2] sm:$0xff]
        %v838 = vld [vmem:[#allocation2 + $0x8] sm:$0xff]
        %841 = vst [vmem:[#allocation1] ss:$2 sm:$0xff] %v837
        %s842 = scalar_lea.vmem [#allocation1], 16
        %843 = vst [vmem:[%s842] ss:$2 sm:$0xff] %v838
        %v844 = vld.sshfl [vmem:[#allocation1] sm:$0xff pattern:$0x75316420]
        %v845 = vld.sshfl [vmem:[#allocation1 + $0x8] sm:$0xff pattern:$0x75316420]
        %v846 = vld.sshfl [vmem:[#allocation1 + $0x10] sm:$0xff pattern:$0x75316420]
        %v847 = vld.sshfl [vmem:[#allocation1 + $0x18] sm:$0xff pattern:$0x75316420]
        %848 = vrot.lane.b32.xlu0 %v844, 46
        %v849 = vpop.permute.xlu0 %848
        %850 = vrot.lane.b32.xlu0 %v845, 46
        %v851 = vpop.permute.xlu0 %850
        %852 = vrot.lane.b32.xlu0 %v846, 46
        %v853 = vpop.permute.xlu0 %852
        %854 = vrot.lane.b32.xlu0 %v847, 46
        %v855 = vpop.permute.xlu0 %854
        %vm856 = vcmask 375808
        %v857 = vsel %vm856, %v849, %v851
        %v858 = vsel %vm856, %v851, %v853
        %v859 = vsel %vm856, %v853, %v855
        %863 = vst [vmem:[#allocation3 + $0x108] sm:$0xf] %v857
        %864 = vst [vmem:[#allocation3 + $0x110] sm:$0xf] %v858
        %865 = vst [vmem:[#allocation3 + $0x118] sm:$0xf] %v859
        %v866 = vld [vmem:[#allocation2] sm:$0xff]
        %v867 = vld [vmem:[#allocation2 + $0x8] sm:$0xff]
        %s870 = scalar_lea.vmem [#allocation1], 1
        %871 = vst [vmem:[%s870] ss:$2 sm:$0xff] %v866
        %s872 = scalar_lea.vmem [#allocation1], 17
        %873 = vst [vmem:[%s872] ss:$2 sm:$0xff] %v867
        %v874 = vld.sshfl [vmem:[#allocation1] sm:$0xff pattern:$0x75316420]
        %v875 = vld.sshfl [vmem:[#allocation1 + $0x8] sm:$0xff pattern:$0x75316420]
        %v876 = vld.sshfl [vmem:[#allocation1 + $0x10] sm:$0xff pattern:$0x75316420]
        %v877 = vld.sshfl [vmem:[#allocation1 + $0x18] sm:$0xff pattern:$0x75316420]
        %878 = vrot.lane.b32.xlu0 %v874, 45
        %v879 = vpop.permute.xlu0 %878
        %880 = vrot.lane.b32.xlu0 %v875, 45
        %v881 = vpop.permute.xlu0 %880
        %882 = vrot.lane.b32.xlu0 %v876, 45
        %v883 = vpop.permute.xlu0 %882
        %884 = vrot.lane.b32.xlu0 %v877, 45
        %v885 = vpop.permute.xlu0 %884
        %vm886 = vcmask 367616
        %v887 = vsel %vm886, %v879, %v881
        %v888 = vsel %vm886, %v881, %v883
        %v889 = vsel %vm886, %v883, %v885
        %893 = vst [vmem:[#allocation3 + $0x108] sm:$0xf0] %v887
        %894 = vst [vmem:[#allocation3 + $0x110] sm:$0xf0] %v888
        %895 = vst [vmem:[#allocation3 + $0x118] sm:$0xf0] %v889
        %v896 = vld [vmem:[#allocation2] sm:$0xff]
        %v897 = vld [vmem:[#allocation2 + $0x8] sm:$0xff]
        %900 = vst [vmem:[#allocation1] ss:$2 sm:$0xff] %v896
        %s901 = scalar_lea.vmem [#allocation1], 16
        %902 = vst [vmem:[%s901] ss:$2 sm:$0xff] %v897
        %v903 = vld.sshfl [vmem:[#allocation1] sm:$0xff pattern:$0x75316420]
        %v904 = vld.sshfl [vmem:[#allocation1 + $0x8] sm:$0xff pattern:$0x75316420]
        %v905 = vld.sshfl [vmem:[#allocation1 + $0x10] sm:$0xff pattern:$0x75316420]
        %v906 = vld.sshfl [vmem:[#allocation1 + $0x18] sm:$0xff pattern:$0x75316420]
        %907 = vrot.lane.b32.xlu0 %v903, 44
        %v908 = vpop.permute.xlu0 %907
        %909 = vrot.lane.b32.xlu0 %v904, 44
        %v910 = vpop.permute.xlu0 %909
        %911 = vrot.lane.b32.xlu0 %v905, 44
        %v912 = vpop.permute.xlu0 %911
        %913 = vrot.lane.b32.xlu0 %v906, 44
        %v914 = vpop.permute.xlu0 %913
        %vm915 = vcmask 359424
        %v916 = vsel %vm915, %v908, %v910
        %v917 = vsel %vm915, %v910, %v912
        %v918 = vsel %vm915, %v912, %v914
        %922 = vst [vmem:[#allocation3 + $0x120] sm:$0xf] %v916
        %923 = vst [vmem:[#allocation3 + $0x128] sm:$0xf] %v917
        %924 = vst [vmem:[#allocation3 + $0x130] sm:$0xf] %v918
        %v925 = vld [vmem:[#allocation4] sm:$0x3f]
        %v926 = vld [vmem:[#allocation3] sm:$0xff]
        %v927 = vld [vmem:[#allocation3 + $0x8] sm:$0xff]
        %v928 = vld [vmem:[#allocation3 + $0x10] sm:$0xff]
        %v929 = vld [vmem:[#allocation3 + $0x18] sm:$0xff]
        %v930 = vld [vmem:[#allocation3 + $0x20] sm:$0xff]
        %v931 = vld [vmem:[#allocation3 + $0x28] sm:$0xff]
        %v932 = vld [vmem:[#allocation3 + $0x30] sm:$0xff]
        %v933 = vld [vmem:[#allocation3 + $0x38] sm:$0xff]
        %v934 = vld [vmem:[#allocation3 + $0x40] sm:$0xff]
        %v935 = vld [vmem:[#allocation3 + $0x48] sm:$0xff]
        %v936 = vld [vmem:[#allocation3 + $0x50] sm:$0xff]
        %v937 = vld [vmem:[#allocation3 + $0x58] sm:$0xff]
        %v938 = vld [vmem:[#allocation3 + $0x60] sm:$0xff]
        %v939 = vld [vmem:[#allocation3 + $0x68] sm:$0xff]
        %v940 = vld [vmem:[#allocation3 + $0x70] sm:$0xff]
        %v941 = vld [vmem:[#allocation3 + $0x78] sm:$0xff]
        %v942 = vld [vmem:[#allocation3 + $0x80] sm:$0xff]
        %v943 = vld [vmem:[#allocation3 + $0x88] sm:$0xff]
        %v944 = vld [vmem:[#allocation3 + $0x90] sm:$0xff]
        %v945 = vld [vmem:[#allocation3 + $0x98] sm:$0xff]
        %v946 = vld [vmem:[#allocation3 + $0xa0] sm:$0xff]
        %v947 = vld [vmem:[#allocation3 + $0xa8] sm:$0xff]
        %v948 = vld [vmem:[#allocation3 + $0xb0] sm:$0xff]
        %v949 = vld [vmem:[#allocation3 + $0xb8] sm:$0xff]
        %v950 = vld [vmem:[#allocation3 + $0xc0] sm:$0xff]
        %v951 = vld [vmem:[#allocation3 + $0xc8] sm:$0xff]
        %v952 = vld [vmem:[#allocation3 + $0xd0] sm:$0xff]
        %v953 = vld [vmem:[#allocation3 + $0xd8] sm:$0xff]
        %v954 = vld [vmem:[#allocation3 + $0xe0] sm:$0xff]
        %v955 = vld [vmem:[#allocation3 + $0xe8] sm:$0xff]
        %v956 = vld [vmem:[#allocation3 + $0xf0] sm:$0xff]
        %v957 = vld [vmem:[#allocation3 + $0xf8] sm:$0xff]
        %v958 = vld [vmem:[#allocation3 + $0x100] sm:$0xff]
        %v959 = vld [vmem:[#allocation3 + $0x108] sm:$0xff]
        %v960 = vld [vmem:[#allocation3 + $0x110] sm:$0xff]
        %v961 = vld [vmem:[#allocation3 + $0x118] sm:$0xff]
        %v962 = vld [vmem:[#allocation3 + $0x120] sm:$0xf]
        %v963 = vld [vmem:[#allocation3 + $0x128] sm:$0xf]
        %v964 = vld [vmem:[#allocation3 + $0x130] sm:$0xf]
        %vm965 = vcmask 818176
        %v967 = vsel %vm965, %v925, 0
        %vm969 = vcmask 1043456
        %v971 = vsel %vm969, %v962, 0
        %v974 = vsel %vm969, %v963, 0
        %v977 = vsel %vm969, %v964, 0
        %979 = vmatpush.msra.mxu0 0.0
        %980 = vmatpush.msra.mxu0 0.0
        %981 = vmatpush.msra.mxu0 0.0
        %982 = vmatpush.msra.mxu0 %v971
        %983 = vmatpush.msra.mxu0 %v959
        %984 = vmatpush.msra.mxu0 %v956
        %985 = vmatpush.msra.mxu0 %v953
        %986 = vmatpush.msra.mxu0 %v950
        %987 = vmatpush.msra.mxu0 %v947
        %988 = vmatpush.msra.mxu0 %v944
        %989 = vmatpush.msra.mxu0 %v941
        %990 = vmatpush.msra.mxu0 %v938
        %991 = vmatpush.msra.mxu0 %v935
        %992 = vmatpush.msra.mxu0 %v932
        %993 = vmatpush.msra.mxu0 %v929
        %994 = vmatpush.msra.mxu0 %v926
        %995 = vmatmul.f32.gmra.mxu0 %v967
        %v996 = vpop.f32.mrf.mxu0
        %v997 = vadd.f32 0.0, %v996
        %998 = vdwg.mxu0
        %999 = vmatpush.msra.mxu0 0.0
        %1000 = vmatpush.msra.mxu0 0.0
        %1001 = vmatpush.msra.mxu0 0.0
        %1002 = vmatpush.msra.mxu0 %v974
        %1003 = vmatpush.msra.mxu0 %v960
        %1004 = vmatpush.msra.mxu0 %v957
        %1005 = vmatpush.msra.mxu0 %v954
        %1006 = vmatpush.msra.mxu0 %v951
        %1007 = vmatpush.msra.mxu0 %v948
        %1008 = vmatpush.msra.mxu0 %v945
        %1009 = vmatpush.msra.mxu0 %v942
        %1010 = vmatpush.msra.mxu0 %v939
        %1011 = vmatpush.msra.mxu0 %v936
        %1012 = vmatpush.msra.mxu0 %v933
        %1013 = vmatpush.msra.mxu0 %v930
        %1014 = vmatpush.msra.mxu0 %v927
        %1015 = vmatmul.f32.gmra.mxu0 %v967
        %v1016 = vpop.f32.mrf.mxu0
        %v1017 = vadd.f32 0.0, %v1016
        %1018 = vdwg.mxu0
        %1019 = vmatpush.msra.mxu0 0.0
        %1020 = vmatpush.msra.mxu0 0.0
        %1021 = vmatpush.msra.mxu0 0.0
        %1022 = vmatpush.msra.mxu0 %v977
        %1023 = vmatpush.msra.mxu0 %v961
        %1024 = vmatpush.msra.mxu0 %v958
        %1025 = vmatpush.msra.mxu0 %v955
        %1026 = vmatpush.msra.mxu0 %v952
        %1027 = vmatpush.msra.mxu0 %v949
        %1028 = vmatpush.msra.mxu0 %v946
        %1029 = vmatpush.msra.mxu0 %v943
        %1030 = vmatpush.msra.mxu0 %v940
        %1031 = vmatpush.msra.mxu0 %v937
        %1032 = vmatpush.msra.mxu0 %v934
        %1033 = vmatpush.msra.mxu0 %v931
        %1034 = vmatpush.msra.mxu0 %v928
        %1035 = vmatmul.f32.gmra.mxu0 %v967
        %v1036 = vpop.f32.mrf.mxu0
        %v1037 = vadd.f32 0.0, %v1036
        %1038 = vdwg.mxu0
        %1039 = vst [vmem:[%s178] sm:$0x3f] %v997
        %1040 = vst [vmem:[%s178 + $0x8] sm:$0x3f] %v1017
        %1041 = vst [vmem:[%s178 + $0x10] sm:$0x3f] %v1037
        %p1042 = scmp.lt.s32.totalorder %s17, 1
        %s1043 = scalar_select %p1042, %s17, 1
        %s1044 = smul.addr %s1043, 3
        %s1045 = smul.addr %s1044, 8
        %s1046 = scalar_lea.vmem %s2, %s1045
        // Predicated region
        $region37: #{tpu_custom_call.1} parent=27 // pred_check
          %p1047 = pneg %p82
        $region38: #{tpu_custom_call.1} parent=27 // pred_check_branch
          %1049 = sbr.rel (%p1047) target = $region40
        $region39: #{tpu_custom_call.1} parent=27 // pred_region
          _
        $region40: #{tpu_custom_call.1} parent=27 // pred_fallthru
          _
      $region28: #{tpu_custom_call.1} parent=5 // pred_fallthru
        _
      %p1050 = scmp.le.s32.totalorder 2, %s12
      // Predicated region
      $region41: #{tpu_custom_call.1} parent=5 // pred_check
        %p1051 = pneg %p1050
      $region42: #{tpu_custom_call.1} parent=5 // pred_check_branch
        %1053 = sbr.rel (%p1051) target = $region44
      $region43: #{tpu_custom_call.1} parent=5 // pred_region
        %s1054 = ssub.s32 %s12, 2
        // Predicated region
        $region45: #{tpu_custom_call.1} parent=43 // pred_check
          %p1055 = pneg %p88
        $region46: #{tpu_custom_call.1} parent=43 // pred_check_branch
          %1057 = sbr.rel (%p1055) target = $region48
        $region47: #{tpu_custom_call.1} parent=43 // pred_region
          %p1058 = scmp.lt.s32.totalorder %s18, 1
          %s1059 = scalar_select %p1058, %s18, 1
          %s1060 = smul.addr %s1059, 3
          %s1061 = smul.addr %s1060, 8
          %s1062 = scalar_lea.vmem %s2, %s1061
        $region48: #{tpu_custom_call.1} parent=43 // pred_fallthru
          _
      $region44: #{tpu_custom_call.1} parent=5 // pred_fallthru
        _
    $region6: #{tpu_custom_call.1} parent=1 // loop_footer
      %s16 = sadd.s32 1, %s12
    $region7: #{tpu_custom_call.1} parent=1 // loop_footer_branch
      %11 = sbr.rel target = $region3
    $region8: #{tpu_custom_call.1} parent=1 // loop_exit
      _
    %1063 = vsyncpa [#allocation5], 1
    %s1064 = scalar_lea.sflag [#allocation5], 1
    %1065 = vsyncpa %s1064, 1
    %1066 = vsyncpa [#allocation7], 1
    %s1067 = scalar_lea.sflag [#allocation7], 1
    %1068 = vsyncpa %s1067, 1

</llo_original>
